<compile_context>
chip_gen: v7x
topology: tpu7x:2x2x1
jax: 0.10.0
libtpu: 0.0.40
codegen_flags: <defaults>
</compile_context>

<pallas_src>
import functools

import jax
import jax.numpy as jnp
from jax import lax
from jax.experimental import pallas as pl
from jax.experimental.pallas import tpu as pltpu

BN_EPS = 1e-5
LN_EPS = 1e-5
LANE = 128
SUBLANE = 8
_MAX_SINGLE = 2048       # rows handled by one un-gridded invocation
_TILE_N = 1024           # row tile for the gridded path

_VMEM = pltpu.MemorySpace.VMEM
_SMEM = pltpu.MemorySpace.SMEM


# ----------------------------- kernels --------------------------------------

def _fc_kernel(x_ref, w_ref, b_ref, o_ref):
    # y = x @ W^T + b  (W pre-transposed + zero-padded to a lane-dense C).
    o_ref[...] = (
        jnp.dot(x_ref[...].astype(jnp.bfloat16), w_ref[...],
                preferred_element_type=jnp.float32)
        + b_ref[...]
    )


def _mlp_kernel(x_ref, a0_ref, al_ref, ws_ref, bs_ref, wf_ref, bf_ref, o_ref,
                *, n_res, n_valid):
    x = x_ref[...]                                    # (TN, H) f32

    # block 0: PReLU (+ Dropout == identity at inference); scalar from SMEM.
    a0 = a0_ref[0]
    x = jnp.where(x >= 0, x, a0 * x)

    # residual blocks: (Linear with BN folded in) -> PReLU, + skip. Static unroll.
    for l in range(n_res):
        h = jnp.dot(x.astype(jnp.bfloat16), ws_ref[l],
                    preferred_element_type=jnp.float32) + bs_ref[l]
        a = al_ref[l]                                 # SMEM scalar
        h = jnp.where(h >= 0, h, a * h)
        x = h + x

    # final block: Linear -> LayerNorm(nclass, elementwise_affine=False).
    y = jnp.dot(x.astype(jnp.bfloat16), wf_ref[...],
                preferred_element_type=jnp.float32) + bf_ref[...]
    c_pad = y.shape[-1]
    if n_valid == c_pad:
        m = jnp.mean(y, axis=-1, keepdims=True)
        v = jnp.mean(jnp.square(y - m), axis=-1, keepdims=True)
    else:
        # LN statistics over the real n_valid classes only (rest is zero-pad).
        mask = lax.broadcasted_iota(jnp.int32, y.shape, 1) < n_valid
        inv_n = jnp.float32(1.0 / n_valid)
        m = jnp.sum(jnp.where(mask, y, 0.0), axis=-1, keepdims=True) * inv_n
        d = jnp.where(mask, y - m, 0.0)
        v = jnp.sum(d * d, axis=-1, keepdims=True) * inv_n
    o_ref[...] = (y - m) * lax.rsqrt(v + LN_EPS)


# ----------------------------- helpers ---------------------------------------

def _round_up(x, m):
    return ((x + m - 1) // m) * m


def _pad_rows(x, multiple):
    """Zero-pad the batch axis up to a multiple (padded rows sliced off later)."""
    n = x.shape[0]
    n_pad = _round_up(max(n, 1), multiple)
    if n_pad != n:
        x = jnp.pad(x, ((0, n_pad - n), (0, 0)))
    return x, n_pad


def _prep_mlp_params(p):
    """Fold eval-mode BN into residual Linears; pad/cast for the kernel."""
    n_res, H = p["ws"].shape[0], p["ws"].shape[2]
    C = p["wf"].shape[0]
    C_pad = _round_up(C, LANE)

    inv_std = lax.rsqrt(p["bn_var"] + BN_EPS)                  # (L, H)
    ws_t = jnp.transpose(p["ws"], (0, 2, 1))                   # (L, H_in, H_out)
    ws_f = (ws_t * inv_std[:, None, :]).astype(jnp.bfloat16)   # BN scale folded
    bs_f = ((p["bs"] - p["bn_mean"]) * inv_std).reshape(n_res, 1, H)

    wf_p = jnp.zeros((H, C_pad), jnp.float32).at[:, :C].set(p["wf"].T)
    wf_p = wf_p.astype(jnp.bfloat16)
    bf_p = jnp.zeros((1, C_pad), jnp.float32).at[:, :C].set(p["bf"])

    a0 = p["a0"].astype(jnp.float32)                           # (1,)  -> SMEM
    al = p["alphas"].astype(jnp.float32)                       # (L,)  -> SMEM
    return dict(a0=a0, al=al, ws=ws_f, bs=bs_f, wf=wf_p, bf=bf_p,
                n_res=n_res, C=C, C_pad=C_pad, H=H)


# ----------------------------- wrappers --------------------------------------

def fc_forward(x, w, b):
    """x:(N,H); w:(C,H) PyTorch layout; b:(C,) -> (N,C)."""
    N, H = x.shape
    C = w.shape[0]
    C_pad = _round_up(C, LANE)
    w_p = jnp.zeros((H, C_pad), jnp.float32).at[:, :C].set(w.T).astype(jnp.bfloat16)
    b_p = jnp.zeros((1, C_pad), jnp.float32).at[:, :C].set(b)

    if N <= _MAX_SINGLE:
        # Single un-gridded invocation: no pipeline bookkeeping.
        x_p, Np = _pad_rows(x, SUBLANE)
        out = pl.pallas_call(
            _fc_kernel,
            in_specs=[pl.BlockSpec(memory_space=_VMEM)] * 3,
            out_specs=pl.BlockSpec(memory_space=_VMEM),
            out_shape=jax.ShapeDtypeStruct((Np, C_pad), jnp.float32),
        )(x_p, w_p, b_p)
    else:
        # Big row tiles; weights stay resident (constant block index).
        x_p, Np = _pad_rows(x, _TILE_N)
        n_blk = Np // _TILE_N
        out = pl.pallas_call(
            _fc_kernel,
            grid=(n_blk,),
            in_specs=[
                pl.BlockSpec((_TILE_N, H), lambda i: (i, 0)),
                pl.BlockSpec((H, C_pad), lambda i: (0, 0)),
                pl.BlockSpec((1, C_pad), lambda i: (0, 0)),
            ],
            out_specs=pl.BlockSpec((_TILE_N, C_pad), lambda i: (i, 0)),
            out_shape=jax.ShapeDtypeStruct((Np, C_pad), jnp.float32),
            compiler_params=pltpu.CompilerParams(
                dimension_semantics=("parallel",)),
        )(x_p, w_p, b_p)
    return out[:N, :C]


def mlp_forward(x, p):
    """IMDB/Freebase branch. x:(N,H); params in PyTorch layouts."""
    N, H = x.shape
    q = _prep_mlp_params(p)
    n_res, C, C_pad = q["n_res"], q["C"], q["C_pad"]
    kernel = functools.partial(_mlp_kernel, n_res=n_res, n_valid=C)

    if N <= _MAX_SINGLE:
        # No grid: single invocation, whole batch resident in VMEM.
        x_p, Np = _pad_rows(x, SUBLANE)
        out = pl.pallas_call(
            kernel,
            in_specs=[
                pl.BlockSpec(memory_space=_VMEM),   # x
                pl.BlockSpec(memory_space=_SMEM),   # a0  (PReLU scalar)
                pl.BlockSpec(memory_space=_SMEM),   # alphas
                pl.BlockSpec(memory_space=_VMEM),   # folded residual weights
                pl.BlockSpec(memory_space=_VMEM),   # folded residual biases
                pl.BlockSpec(memory_space=_VMEM),   # final weight (lane-padded)
                pl.BlockSpec(memory_space=_VMEM),   # final bias
            ],
            out_specs=pl.BlockSpec(memory_space=_VMEM),
            out_shape=jax.ShapeDtypeStruct((Np, C_pad), jnp.float32),
        )(x_p, q["a0"], q["al"], q["ws"], q["bs"], q["wf"], q["bf"])
    else:
        # Tile the batch axis with big tiles; weights stay VMEM-resident.
        x_p, Np = _pad_rows(x, _TILE_N)
        n_blk = Np // _TILE_N
        out = pl.pallas_call(
            kernel,
            grid=(n_blk,),
            in_specs=[
                pl.BlockSpec((_TILE_N, H), lambda i: (i, 0)),
                pl.BlockSpec(memory_space=_SMEM),
                pl.BlockSpec(memory_space=_SMEM),
                pl.BlockSpec((n_res, H, H), lambda i: (0, 0, 0)),
                pl.BlockSpec((n_res, 1, H), lambda i: (0, 0, 0)),
                pl.BlockSpec((H, C_pad), lambda i: (0, 0)),
                pl.BlockSpec((1, C_pad), lambda i: (0, 0)),
            ],
            out_specs=pl.BlockSpec((_TILE_N, C_pad), lambda i: (i, 0)),
            out_shape=jax.ShapeDtypeStruct((Np, C_pad), jnp.float32),
            compiler_params=pltpu.CompilerParams(
                dimension_semantics=("parallel",)),
        )(x_p, q["a0"], q["al"], q["ws"], q["bs"], q["wf"], q["bf"])
    return out[:N, :C]


def logreg_forward(x, params, dataset):
    if dataset not in ("IMDB", "Freebase"):
        return fc_forward(x, params["fc_w"], params["fc_b"])
    return mlp_forward(x, params)


# ----------------------------- param init ------------------------------------

def xavier_uniform(key, out_f, in_f):
    bound = jnp.sqrt(6.0 / (in_f + out_f))
    return jax.random.uniform(key, (out_f, in_f), jnp.float32, -bound, bound)


def init_params(key, hidden, nclass, n_task_layers):
    n_res = max(n_task_layers - 1, 0)
    keys = jax.random.split(key, n_res + 2)
    if n_res > 0:
        ws = jnp.stack([xavier_uniform(keys[i], hidden, hidden)
                        for i in range(n_res)])
    else:
        ws = jnp.zeros((0, hidden, hidden), jnp.float32)
    params = {
        # MLP branch (IMDB / Freebase)
        "a0": jnp.array([0.25], jnp.float32),                   # PReLU init
        "ws": ws,                                               # (L, H, H)
        "bs": jnp.zeros((n_res, hidden), jnp.float32),
        "bn_mean": jnp.zeros((n_res, hidden), jnp.float32),     # eval running stats
        "bn_var": jnp.ones((n_res, hidden), jnp.float32),
        "alphas": jnp.full((n_res,), 0.25, jnp.float32),
        "wf": xavier_uniform(keys[n_res], nclass, hidden),      # (C, H)
        "bf": jnp.zeros((nclass,), jnp.float32),
        # plain-fc branch (other datasets)
        "fc_w": xavier_uniform(keys[n_res + 1], nclass, hidden),
        "fc_b": jnp.zeros((nclass,), jnp.float32),
    }
    return params


# ----------------------------- references ------------------------------------

def ref_forward(x, p, dataset):
    """Pure-f32 PyTorch-faithful reference (eval mode)."""
    if dataset not in ("IMDB", "Freebase"):
        return x @ p["fc_w"].T + p["fc_b"]
    a0 = p["a0"][0]
    x = jnp.where(x >= 0, x, a0 * x)
    for l in range(p["ws"].shape[0]):
        h = x @ p["ws"][l].T + p["bs"][l]
        h = (h - p["bn_mean"][l]) / jnp.sqrt(p["bn_var"][l] + BN_EPS)
        h = jnp.where(h >= 0, h, p["alphas"][l] * h)
        x = h + x
    y = x @ p["wf"].T + p["bf"]
    m = y.mean(-1, keepdims=True)
    v = ((y - m) ** 2).mean(-1, keepdims=True)
    return (y - m) / jnp.sqrt(v + LN_EPS)


def ref_forward_matched(x, p, dataset):
    """Reference mirroring the kernel's bf16-operand / f32-accumulate math."""
    if dataset not in ("IMDB", "Freebase"):
        w_bf = p["fc_w"].T.astype(jnp.bfloat16)
        return jnp.dot(x.astype(jnp.bfloat16), w_bf,
                       preferred_element_type=jnp.float32) + p["fc_b"]
    q = _prep_mlp_params(p)
    a0 = q["a0"][0]
    x = jnp.where(x >= 0, x, a0 * x)
    for l in range(q["n_res"]):
        h = jnp.dot(x.astype(jnp.bfloat16), q["ws"][l],
                    preferred_element_type=jnp.float32) + q["bs"][l]
        h = jnp.where(h >= 0, h, q["al"][l] * h)
        x = h + x
    y = jnp.dot(x.astype(jnp.bfloat16), q["wf"],
                preferred_element_type=jnp.float32) + q["bf"]
    y = y[:, :q["C"]]
    m = y.mean(-1, keepdims=True)
    v = ((y - m) ** 2).mean(-1, keepdims=True)
    return (y - m) * lax.rsqrt(v + LN_EPS)


# ----------------------------- main -------------------------------------------

if __name__ == "__main__":
    # args analog: hidden=32, num_channels=1, n_task_layers=3, num_classes=8
    N, HIDDEN, NCLASS, N_TASK_LAYERS = 8, 32, 8, 3
    N_MED = 1024          # single-call path (<= _MAX_SINGLE)
    N_BIG = 2500          # ragged, tiled "parallel"-grid path

    key = jax.random.PRNGKey(0)
    kx, kxm, kxb, kp = jax.random.split(key, 4)
    x = jax.random.normal(kx, (N, HIDDEN), jnp.float32)
    xm = jax.random.normal(kxm, (N_MED, HIDDEN), jnp.float32)
    xb = jax.random.normal(kxb, (N_BIG, HIDDEN), jnp.float32)
    params = init_params(kp, HIDDEN, NCLASS, N_TASK_LAYERS)

    # IMDB / Freebase branch (residual MLP head), small N -> single-call path.
    out_mlp = jax.block_until_ready(logreg_forward(x, params, "IMDB"))
    assert out_mlp.shape == (N, NCLASS)
    assert jnp.allclose(out_mlp, ref_forward_matched(x, params, "IMDB"),
                        atol=1e-4, rtol=1e-4)
    assert jnp.allclose(out_mlp, ref_forward(x, params, "IMDB"),
                        atol=5e-2, rtol=5e-2)

    # Same branch, medium N -> still single-call (whole batch VMEM-resident).
    out_mlp_m = jax.block_until_ready(logreg_forward(xm, params, "Freebase"))
    assert out_mlp_m.shape == (N_MED, NCLASS)
    assert jnp.allclose(out_mlp_m, ref_forward_matched(xm, params, "Freebase"),
                        atol=1e-4, rtol=1e-4)

    # Same branch, ragged large N -> row-padded, tiled "parallel"-grid path.
    out_mlp_b = jax.block_until_ready(logreg_forward(xb, params, "IMDB"))
    assert out_mlp_b.shape == (N_BIG, NCLASS)
    assert jnp.allclose(out_mlp_b, ref_forward_matched(xb, params, "IMDB"),
                        atol=1e-4, rtol=1e-4)

    # Other-dataset branch (single Linear), all paths.
    out_fc = jax.block_until_ready(logreg_forward(x, params, "DBLP"))
    assert out_fc.shape == (N, NCLASS)
    assert jnp.allclose(out_fc, ref_forward_matched(x, params, "DBLP"),
                        atol=1e-4, rtol=1e-4)
    assert jnp.allclose(out_fc, ref_forward(x, params, "DBLP"),
                        atol=5e-2, rtol=5e-2)

    out_fc_b = jax.block_until_ready(logreg_forward(xb, params, "DBLP"))
    assert out_fc_b.shape == (N_BIG, NCLASS)
    assert jnp.allclose(out_fc_b, ref_forward_matched(xb, params, "DBLP"),
                        atol=1e-4, rtol=1e-4)

    print("KERNEL_OK")
</pallas_src>

<mosaic_0001>
module attributes {stable_mosaic.version = 11 : i64} {
  func.func @_mlp_kernel(%arg0: memref<8x32xf32, #tpu.memory_space<vmem>>, %arg1: memref<1xf32, #tpu.memory_space<smem>>, %arg2: memref<2xf32, #tpu.memory_space<smem>>, %arg3: memref<2x32x32xbf16, #tpu.memory_space<vmem>>, %arg4: memref<2x1x32xf32, #tpu.memory_space<vmem>>, %arg5: memref<32x128xbf16, #tpu.memory_space<vmem>>, %arg6: memref<1x128xf32, #tpu.memory_space<vmem>>, %arg7: memref<8x128xf32, #tpu.memory_space<vmem>>) attributes {dimension_semantics = [], scalar_prefetch = 0 : i64, scratch_operands = 0 : i64, tpu.core_type = #tpu.core_type<tc>} {
    %c0 = arith.constant 0 : index
    %c0_0 = arith.constant 0 : index
    %0 = vector.load %arg0[%c0, %c0_0] : memref<8x32xf32, #tpu.memory_space<vmem>>, vector<8x32xf32>
    %c0_1 = arith.constant 0 : index
    %1 = memref.load %arg1[%c0_1] : memref<1xf32, #tpu.memory_space<smem>>
    %cst = arith.constant 0.000000e+00 : f32
    %2 = vector.broadcast %cst : f32 to vector<8x32xf32>
    %3 = arith.cmpf oge, %0, %2 : vector<8x32xf32>
    %4 = vector.broadcast %1 : f32 to vector<8x32xf32>
    %5 = arith.mulf %4, %0 : vector<8x32xf32>
    %6 = arith.select %3, %0, %5 : vector<8x32xi1>, vector<8x32xf32>
    %7 = arith.truncf %6 : vector<8x32xf32> to vector<8x32xbf16>
    %c0_2 = arith.constant 0 : index
    %c0_3 = arith.constant 0 : index
    %c0_4 = arith.constant 0 : index
    %8 = vector.load %arg3[%c0_2, %c0_3, %c0_4] : memref<2x32x32xbf16, #tpu.memory_space<vmem>>, vector<1x32x32xbf16>
    %9 = vector.shape_cast %8 : vector<1x32x32xbf16> to vector<32x32xbf16>
    %cst_5 = arith.constant dense<0.000000e+00> : vector<8x32xf32>
    %10 = tpu.matmul %7, %9, %cst_5 {dimension_numbers = #tpu.dot_dimension_numbers<[1], [0], [0], [1], [0, 0, 1, 1], [], []>} : vector<8x32xbf16>, vector<32x32xbf16>, vector<8x32xf32> -> vector<8x32xf32>
    %c0_6 = arith.constant 0 : index
    %c0_7 = arith.constant 0 : index
    %c0_8 = arith.constant 0 : index
    %11 = vector.load %arg4[%c0_6, %c0_7, %c0_8] : memref<2x1x32xf32, #tpu.memory_space<vmem>>, vector<1x1x32xf32>
    %12 = vector.shape_cast %11 : vector<1x1x32xf32> to vector<1x32xf32>
    %13 = vector.broadcast %12 : vector<1x32xf32> to vector<8x32xf32>
    %14 = arith.addf %10, %13 : vector<8x32xf32>
    %c0_9 = arith.constant 0 : index
    %15 = memref.load %arg2[%c0_9] : memref<2xf32, #tpu.memory_space<smem>>
    %cst_10 = arith.constant 0.000000e+00 : f32
    %16 = vector.broadcast %cst_10 : f32 to vector<8x32xf32>
    %17 = arith.cmpf oge, %14, %16 : vector<8x32xf32>
    %18 = vector.broadcast %15 : f32 to vector<8x32xf32>
    %19 = arith.mulf %18, %14 : vector<8x32xf32>
    %20 = arith.select %17, %14, %19 : vector<8x32xi1>, vector<8x32xf32>
    %21 = arith.addf %20, %6 : vector<8x32xf32>
    %22 = arith.truncf %21 : vector<8x32xf32> to vector<8x32xbf16>
    %c1 = arith.constant 1 : index
    %c0_11 = arith.constant 0 : index
    %c0_12 = arith.constant 0 : index
    %23 = vector.load %arg3[%c1, %c0_11, %c0_12] : memref<2x32x32xbf16, #tpu.memory_space<vmem>>, vector<1x32x32xbf16>
    %24 = vector.shape_cast %23 : vector<1x32x32xbf16> to vector<32x32xbf16>
    %cst_13 = arith.constant dense<0.000000e+00> : vector<8x32xf32>
    %25 = tpu.matmul %22, %24, %cst_13 {dimension_numbers = #tpu.dot_dimension_numbers<[1], [0], [0], [1], [0, 0, 1, 1], [], []>} : vector<8x32xbf16>, vector<32x32xbf16>, vector<8x32xf32> -> vector<8x32xf32>
    %c1_14 = arith.constant 1 : index
    %c0_15 = arith.constant 0 : index
    %c0_16 = arith.constant 0 : index
    %26 = vector.load %arg4[%c1_14, %c0_15, %c0_16] : memref<2x1x32xf32, #tpu.memory_space<vmem>>, vector<1x1x32xf32>
    %27 = vector.shape_cast %26 : vector<1x1x32xf32> to vector<1x32xf32>
    %28 = vector.broadcast %27 : vector<1x32xf32> to vector<8x32xf32>
    %29 = arith.addf %25, %28 : vector<8x32xf32>
    %c1_17 = arith.constant 1 : index
    %30 = memref.load %arg2[%c1_17] : memref<2xf32, #tpu.memory_space<smem>>
    %cst_18 = arith.constant 0.000000e+00 : f32
    %31 = vector.broadcast %cst_18 : f32 to vector<8x32xf32>
    %32 = arith.cmpf oge, %29, %31 : vector<8x32xf32>
    %33 = vector.broadcast %30 : f32 to vector<8x32xf32>
    %34 = arith.mulf %33, %29 : vector<8x32xf32>
    %35 = arith.select %32, %29, %34 : vector<8x32xi1>, vector<8x32xf32>
    %36 = arith.addf %35, %21 : vector<8x32xf32>
    %37 = arith.truncf %36 : vector<8x32xf32> to vector<8x32xbf16>
    %c0_19 = arith.constant 0 : index
    %c0_20 = arith.constant 0 : index
    %38 = vector.load %arg5[%c0_19, %c0_20] : memref<32x128xbf16, #tpu.memory_space<vmem>>, vector<32x128xbf16>
    %cst_21 = arith.constant dense<0.000000e+00> : vector<8x128xf32>
    %39 = tpu.matmul %37, %38, %cst_21 {dimension_numbers = #tpu.dot_dimension_numbers<[1], [0], [0], [1], [0, 0, 1, 1], [], []>} : vector<8x32xbf16>, vector<32x128xbf16>, vector<8x128xf32> -> vector<8x128xf32>
    %c0_22 = arith.constant 0 : index
    %c0_23 = arith.constant 0 : index
    %40 = vector.load %arg6[%c0_22, %c0_23] : memref<1x128xf32, #tpu.memory_space<vmem>>, vector<1x128xf32>
    %41 = vector.broadcast %40 : vector<1x128xf32> to vector<8x128xf32>
    %42 = arith.addf %39, %41 : vector<8x128xf32>
    %43 = tpu.iota {dimensions = array<i32: 1>} : vector<8x128xi32>
    %c8_i32 = arith.constant 8 : i32
    %44 = vector.broadcast %c8_i32 : i32 to vector<8x128xi32>
    %45 = arith.cmpi slt, %43, %44 : vector<8x128xi32>
    %cst_24 = arith.constant 0.000000e+00 : f32
    %46 = vector.broadcast %cst_24 : f32 to vector<8x128xf32>
    %47 = arith.select %45, %42, %46 : vector<8x128xi1>, vector<8x128xf32>
    %cst_25 = arith.constant dense<0.000000e+00> : vector<8xf32>
    %48 = vector.multi_reduction <add>, %47, %cst_25 [1] : vector<8x128xf32> to vector<8xf32>
    %49 = vector.shape_cast %48 : vector<8xf32> to vector<8x1xf32>
    %cst_26 = arith.constant 1.250000e-01 : f32
    %50 = vector.broadcast %cst_26 : f32 to vector<8x1xf32>
    %51 = arith.mulf %49, %50 : vector<8x1xf32>
    %52 = vector.broadcast %51 : vector<8x1xf32> to vector<8x128xf32>
    %53 = arith.subf %42, %52 : vector<8x128xf32>
    %cst_27 = arith.constant 0.000000e+00 : f32
    %54 = vector.broadcast %cst_27 : f32 to vector<8x128xf32>
    %55 = arith.select %45, %53, %54 : vector<8x128xi1>, vector<8x128xf32>
    %56 = arith.mulf %55, %55 : vector<8x128xf32>
    %cst_28 = arith.constant dense<0.000000e+00> : vector<8xf32>
    %57 = vector.multi_reduction <add>, %56, %cst_28 [1] : vector<8x128xf32> to vector<8xf32>
    %58 = vector.shape_cast %57 : vector<8xf32> to vector<8x1xf32>
    %cst_29 = arith.constant 1.250000e-01 : f32
    %59 = vector.broadcast %cst_29 : f32 to vector<8x1xf32>
    %60 = arith.mulf %58, %59 : vector<8x1xf32>
    %61 = vector.broadcast %51 : vector<8x1xf32> to vector<8x128xf32>
    %62 = arith.subf %42, %61 : vector<8x128xf32>
    %cst_30 = arith.constant 9.99999974E-6 : f32
    %63 = vector.broadcast %cst_30 : f32 to vector<8x1xf32>
    %64 = arith.addf %60, %63 : vector<8x1xf32>
    %65 = math.rsqrt %64 : vector<8x1xf32>
    %66 = vector.broadcast %65 : vector<8x1xf32> to vector<8x128xf32>
    %67 = arith.mulf %62, %66 : vector<8x128xf32>
    %c0_31 = arith.constant 0 : index
    %c0_32 = arith.constant 0 : index
    %68 = vector.load %arg7[%c0_31, %c0_32] : memref<8x128xf32, #tpu.memory_space<vmem>>, vector<8x128xf32>
    tpu.vector_store %arg7[%c0_31, %c0_32], %67 {strides = array<i32>} : memref<8x128xf32, #tpu.memory_space<vmem>>, vector<8x128xf32>,
    return
  }
}

</mosaic_0001>

<llo_original>
// kernel: tpu_custom_call.1
$region0: #{tpu_custom_call.1}
  #allocation0 [shape = 'u32[]', space=smem, size = 0x4, offset = 0x4, fixed_abs, tag = 'smem constant byte address 0x4 - core index']
  #allocation1 [shape = 'u32[144,128]{1,0:T(1,128)}', space=vmem, size = 0x12000, scoped, tag = 'internal scratch']
  #allocation2 [shape = 'f32[1]{0:T(128)S(6)}', space=smem, size = 0x200, scoped, tag = 'scoped memory for tpu_custom_call.1']
  %s0 = inlined_call_operand.hbm [shape: f32[8,32], index: 0, kind: input, shape index: {}]
  %s1 = inlined_call_operand.<no memory space> [shape: f32[1], index: 1, kind: input, shape index: {}]
  %s2 = inlined_call_operand.hbm [shape: f32[2], index: 2, kind: input, shape index: {}]
  %s3 = inlined_call_operand.hbm [shape: bf16[2,32,32], index: 3, kind: input, shape index: {}]
  %s4 = inlined_call_operand.vmem [shape: f32[2,1,32], index: 4, kind: input, shape index: {}]
  %s5 = inlined_call_operand.vmem [shape: bf16[32,128], index: 5, kind: input, shape index: {}]
  %s6 = inlined_call_operand.vmem [shape: f32[1,128], index: 6, kind: input, shape index: {}]
  %s7 = inlined_call_operand.hbm [shape: f32[8,128], index: 7, kind: output, shape index: {}]
  %s8 = sld [smem:[#allocation0]]
  $region50: #{tpu_custom_call.1} parent=0
    _
  %s10 = ssub.s32 1, %s8
  %s11 = scalar_select 0, %s10, %s8
  %12 = sst [smem:[#allocation2]] %s1
  $region1: #{tpu_custom_call.1} parent=0
    #allocation3 [shape = 'u8[4096]{0}', space=vmem, size = 0x1000, scoped, tag = 'input window, operand 0, single buffered']
    #allocation4 [shape = 's32[1]{0}', space=sflag, size = 0x4, scoped, tag = 'scoped memory for tpu_custom_call.1']
    #allocation5 [shape = 's32[1]{0}', space=sflag, size = 0x4, scoped, tag = 'scoped memory for tpu_custom_call.1']
    #allocation6 [shape = 's32[1]{0}', space=sflag, size = 0x4, scoped, tag = 'scoped memory for tpu_custom_call.1']
    #allocation7 [shape = 'u8[512]{0}', space=smem, size = 0x200, scoped, tag = 'input window, operand 2, single buffered']
    #allocation8 [shape = 'u8[16384]{0}', space=vmem, size = 0x4000, scoped, tag = 'input window, operand 3, single buffered']
    #allocation9 [shape = 's32[1]{0}', space=sflag, size = 0x4, scoped, tag = 'scoped memory for tpu_custom_call.1']
    #allocation10 [shape = 'u8[4096]{0}', space=vmem, size = 0x1000, scoped, tag = 'output window, operand 0, single buffered']
    %13 = vsyncpa [#allocation4], 0
    %14 = vsyncpa [#allocation6], 0
    %15 = vsyncpa [#allocation9], 0
    %16 = vsyncpa [#allocation5], 0
    // Predicated region
    $region2: #{tpu_custom_call.1} parent=1 // pred_check
      _
    $region3: #{tpu_custom_call.1} parent=1 // pred_check_branch
      %18 = sbr.rel (0) target = $region5
    $region4: #{tpu_custom_call.1} parent=1 // pred_region
      %s20 = ssub.s32 128, 128
      %21 = vsyncadd [#allocation4], %s20
      %s23 = sshll.u32 [#allocation3], 4
      %s24 = int_to_ptr.vmem [resolvable:$true] %s23
      %26 = dma.hbm_to_vmem [thread:$0]  %s0, 128, %s24, [#allocation4]
    $region5: #{tpu_custom_call.1} parent=1 // pred_fallthru
      _
    // Predicated region
    $region6: #{tpu_custom_call.1} parent=1 // pred_check
      _
    $region7: #{tpu_custom_call.1} parent=1 // pred_check_branch
      %28 = sbr.rel (0) target = $region9
    $region8: #{tpu_custom_call.1} parent=1 // pred_region
      _
    $region9: #{tpu_custom_call.1} parent=1 // pred_fallthru
      _
    // Predicated region
    $region10: #{tpu_custom_call.1} parent=1 // pred_check
      _
    $region11: #{tpu_custom_call.1} parent=1 // pred_check_branch
      %30 = sbr.rel (0) target = $region13
    $region12: #{tpu_custom_call.1} parent=1 // pred_region
      %s32 = ssub.s32 16, 16
      %33 = vsyncadd [#allocation6], %s32
      %36 = dma.hbm_to_smem %s2, 16, [#allocation7], [#allocation6]
    $region13: #{tpu_custom_call.1} parent=1 // pred_fallthru
      _
    // Predicated region
    $region14: #{tpu_custom_call.1} parent=1 // pred_check
      _
    $region15: #{tpu_custom_call.1} parent=1 // pred_check_branch
      %38 = sbr.rel (0) target = $region17
    $region16: #{tpu_custom_call.1} parent=1 // pred_region
      %s40 = ssub.s32 512, 512
      %41 = vsyncadd [#allocation9], %s40
      %s42 = sshll.u32 [#allocation8], 4
      %s43 = int_to_ptr.vmem [resolvable:$true] %s42
      %48 = dma.hbm_to_vmem [thread:$0]  %s3, 512, %s43, [#allocation9], 64, 64, 4
    $region17: #{tpu_custom_call.1} parent=1 // pred_fallthru
      _
    // Predicated region
    $region18: #{tpu_custom_call.1} parent=1 // pred_check
      _
    $region19: #{tpu_custom_call.1} parent=1 // pred_check_branch
      %50 = sbr.rel (0) target = $region21
    $region20: #{tpu_custom_call.1} parent=1 // pred_region
      _
    $region21: #{tpu_custom_call.1} parent=1 // pred_fallthru
      _
    // Predicated region
    $region22: #{tpu_custom_call.1} parent=1 // pred_check
      _
    $region23: #{tpu_custom_call.1} parent=1 // pred_check_branch
      %52 = sbr.rel (0) target = $region25
    $region24: #{tpu_custom_call.1} parent=1 // pred_region
      _
    $region25: #{tpu_custom_call.1} parent=1 // pred_fallthru
      _
    // Predicated region
    $region26: #{tpu_custom_call.1} parent=1 // pred_check
      _
    $region27: #{tpu_custom_call.1} parent=1 // pred_check_branch
      %54 = sbr.rel (0) target = $region29
    $region28: #{tpu_custom_call.1} parent=1 // pred_region
      _
    $region29: #{tpu_custom_call.1} parent=1 // pred_fallthru
      _
    // Predicated region
    $region30: #{tpu_custom_call.1} parent=1 // pred_check
      _
    $region31: #{tpu_custom_call.1} parent=1 // pred_check_branch
      %56 = sbr.rel (0) target = $region33
    $region32: #{tpu_custom_call.1} parent=1 // pred_region
      %57 = dma.done [#allocation4], 128
    $region33: #{tpu_custom_call.1} parent=1 // pred_fallthru
      _
    // Predicated region
    $region34: #{tpu_custom_call.1} parent=1 // pred_check
      _
    $region35: #{tpu_custom_call.1} parent=1 // pred_check_branch
      %59 = sbr.rel (0) target = $region37
    $region36: #{tpu_custom_call.1} parent=1 // pred_region
      %60 = dma.done [#allocation6], 16
    $region37: #{tpu_custom_call.1} parent=1 // pred_fallthru
      _
    // Predicated region
    $region38: #{tpu_custom_call.1} parent=1 // pred_check
      _
    $region39: #{tpu_custom_call.1} parent=1 // pred_check_branch
      %62 = sbr.rel (0) target = $region41
    $region40: #{tpu_custom_call.1} parent=1 // pred_region
      %63 = dma.done [#allocation9], 512
    $region41: #{tpu_custom_call.1} parent=1 // pred_fallthru
      _
    %64 = sfence
    %v66 = vld [vmem:[#allocation3] sm:$0xff]
    %s67 = sld [smem:[#allocation2]]
    %vm68 = vcmp.ge.f32.partialorder %v66, 0.0
    %v69 = vstv %s67
    %v70 = vmul.f32 %v69, %v66
    %v71 = vsel %vm68, %v66, %v70
    %v72 = vpack.c.bf16 %v71, %v71
    %v73 = vld [vmem:[#allocation8] sm:$0xf]
    %v74 = vld [vmem:[#allocation8 + $0x4] sm:$0xf]
    %v75 = vld [vmem:[#allocation8 + $0x8] sm:$0xf]
    %v76 = vld [vmem:[#allocation8 + $0xc] sm:$0xf]
    %v77 = vld [vmem:[%s4] sm:$0x1]
    %v79 = vlaneseq
    %v80 = vshrl.u32 %v79, 7
    %v81 = vsub.s32 0, %v80
    %v82 = vrot.slane %v77, %v81
    %v88 = vunpack.c.l.b16 %v73
    %v89 = vunpack.c.l.b16 %v74
    %v90 = vunpack.c.l.b16 %v75
    %v91 = vunpack.c.l.b16 %v76
    %v92 = vpack.c.b16 %v89, %v88
    %v93 = vpack.c.b16 %v91, %v90
    %vm96 = vcmask 261120
    %v98 = vsel %vm96, %v72, 0
    %100 = vmatprep.subr.bf16.mxu0 0
    %101 = vmatpush1.bf16.msra.mxu0 %v92
    %102 = vmatprep.subr.bf16.mxu0 0
    %103 = vmatpush1.bf16.msra.mxu0 %v93
    %104 = vmatprep.subr.bf16.mxu0 0
    %105 = vmatpush1.bf16.msra.mxu0 0
    %106 = vmatprep.subr.bf16.mxu0 0
    %107 = vmatpush1.bf16.msra.mxu0 0
    %108 = vmatprep.subr.bf16.mxu0 0
    %109 = vmatpush1.bf16.msra.mxu0 0
    %110 = vmatprep.subr.bf16.mxu0 0
    %111 = vmatpush1.bf16.msra.mxu0 0
    %112 = vmatprep.subr.bf16.mxu0 0
    %113 = vmatpush1.bf16.msra.mxu0 0
    %114 = vmatprep.subr.bf16.mxu0 0
    %115 = vmatpush1.bf16.msra.mxu0 0
    %116 = vmatprep.subr.bf16.mxu0 0
    %117 = vmatpush1.bf16.msra.mxu0 0
    %118 = vmatprep.subr.bf16.mxu0 0
    %119 = vmatpush1.bf16.msra.mxu0 0
    %120 = vmatprep.subr.bf16.mxu0 0
    %121 = vmatpush1.bf16.msra.mxu0 0
    %122 = vmatprep.subr.bf16.mxu0 0
    %123 = vmatpush1.bf16.msra.mxu0 0
    %124 = vmatprep.subr.bf16.mxu0 0
    %125 = vmatpush1.bf16.msra.mxu0 0
    %126 = vmatprep.subr.bf16.mxu0 0
    %127 = vmatpush1.bf16.msra.mxu0 0
    %128 = vmatprep.subr.bf16.mxu0 0
    %129 = vmatpush1.bf16.msra.mxu0 0
    %130 = vmatprep.subr.bf16.mxu0 0
    %131 = vmatpush1.bf16.msra.mxu0 0
    %132 = vmatprep.mubr.bf16.mxu0 0
    %133 = vmatmul.mubr.bf16.gmra.mrb[0].mxu0 %v98
    %v134 = vpop.f32.mrb[0].mxu0
    %v135 = vadd.f32 %v82, %v134
    %v136 = vpop.f32.mrb[0].mxu0
    %v137 = vpop.f32.mrb[0].mxu0
    %v138 = vpop.f32.mrb[0].mxu0
    %139 = vdwg.mxu0
    %s140 = sld [smem:[#allocation7]]
    %vm141 = vcmp.ge.f32.partialorder %v135, 0.0
    %v142 = vstv %s140
    %v143 = vmul.f32 %v142, %v135
    %v144 = vsel %vm141, %v135, %v143
    %v145 = vadd.f32 %v144, %v71
    %v146 = vpack.c.bf16 %v145, %v145
    %s147 = scalar_lea.vmem [#allocation8], 16
    %v148 = vld [vmem:[%s147] sm:$0xf]
    %v149 = vld [vmem:[%s147 + $0x4] sm:$0xf]
    %v150 = vld [vmem:[%s147 + $0x8] sm:$0xf]
    %v151 = vld [vmem:[%s147 + $0xc] sm:$0xf]
    %s152 = scalar_lea.vmem %s4, 1
    %v153 = vld [vmem:[%s152] sm:$0x1]
    %v155 = vlaneseq
    %v156 = vshrl.u32 %v155, 7
    %v157 = vsub.s32 0, %v156
    %v158 = vrot.slane %v153, %v157
    %v164 = vunpack.c.l.b16 %v148
    %v165 = vunpack.c.l.b16 %v149
    %v166 = vunpack.c.l.b16 %v150
    %v167 = vunpack.c.l.b16 %v151
    %v168 = vpack.c.b16 %v165, %v164
    %v169 = vpack.c.b16 %v167, %v166
    %v173 = vsel %vm96, %v146, 0
    %175 = vmatprep.subr.bf16.mxu0 0
    %176 = vmatpush1.bf16.msra.mxu0 %v168
    %177 = vmatprep.subr.bf16.mxu0 0
    %178 = vmatpush1.bf16.msra.mxu0 %v169
    %179 = vmatprep.subr.bf16.mxu0 0
    %180 = vmatpush1.bf16.msra.mxu0 0
    %181 = vmatprep.subr.bf16.mxu0 0
    %182 = vmatpush1.bf16.msra.mxu0 0
    %183 = vmatprep.subr.bf16.mxu0 0
    %184 = vmatpush1.bf16.msra.mxu0 0
    %185 = vmatprep.subr.bf16.mxu0 0
    %186 = vmatpush1.bf16.msra.mxu0 0
    %187 = vmatprep.subr.bf16.mxu0 0
    %188 = vmatpush1.bf16.msra.mxu0 0
    %189 = vmatprep.subr.bf16.mxu0 0
    %190 = vmatpush1.bf16.msra.mxu0 0
    %191 = vmatprep.subr.bf16.mxu0 0
    %192 = vmatpush1.bf16.msra.mxu0 0
    %193 = vmatprep.subr.bf16.mxu0 0
    %194 = vmatpush1.bf16.msra.mxu0 0
    %195 = vmatprep.subr.bf16.mxu0 0
    %196 = vmatpush1.bf16.msra.mxu0 0
    %197 = vmatprep.subr.bf16.mxu0 0
    %198 = vmatpush1.bf16.msra.mxu0 0
    %199 = vmatprep.subr.bf16.mxu0 0
    %200 = vmatpush1.bf16.msra.mxu0 0
    %201 = vmatprep.subr.bf16.mxu0 0
    %202 = vmatpush1.bf16.msra.mxu0 0
    %203 = vmatprep.subr.bf16.mxu0 0
    %204 = vmatpush1.bf16.msra.mxu0 0
    %205 = vmatprep.subr.bf16.mxu0 0
    %206 = vmatpush1.bf16.msra.mxu0 0
    %207 = vmatprep.mubr.bf16.mxu0 0
    %208 = vmatmul.mubr.bf16.gmra.mrb[0].mxu0 %v173
    %v209 = vpop.f32.mrb[0].mxu0
    %v210 = vadd.f32 %v158, %v209
    %v211 = vpop.f32.mrb[0].mxu0
    %v212 = vpop.f32.mrb[0].mxu0
    %v213 = vpop.f32.mrb[0].mxu0
    %214 = vdwg.mxu0
    %s215 = sld [smem:[#allocation7 + $0x1]]
    %vm216 = vcmp.ge.f32.partialorder %v210, 0.0
    %v217 = vstv %s215
    %v218 = vmul.f32 %v217, %v210
    %v219 = vsel %vm216, %v210, %v218
    %v220 = vadd.f32 %v219, %v145
    %v221 = vpack.c.bf16 %v220, %v220
    %v222 = vld [vmem:[%s5] sm:$0xf]
    %v223 = vld [vmem:[%s5 + $0x4] sm:$0xf]
    %v224 = vld [vmem:[%s5 + $0x8] sm:$0xf]
    %v225 = vld [vmem:[%s5 + $0xc] sm:$0xf]
    %v226 = vld [vmem:[%s6] sm:$0x1]
    %v228 = vlaneseq
    %v229 = vshrl.u32 %v228, 7
    %v230 = vsub.s32 0, %v229
    %v231 = vrot.slane %v226, %v230
    %v237 = vunpack.c.l.b16 %v222
    %v238 = vunpack.c.l.b16 %v223
    %v239 = vunpack.c.l.b16 %v224
    %v240 = vunpack.c.l.b16 %v225
    %v241 = vpack.c.b16 %v238, %v237
    %v242 = vpack.c.b16 %v240, %v239
    %v246 = vsel %vm96, %v221, 0
    %248 = vmatprep.subr.bf16.mxu0 0
    %249 = vmatpush1.bf16.msra.mxu0 %v241
    %250 = vmatprep.subr.bf16.mxu0 0
    %251 = vmatpush1.bf16.msra.mxu0 %v242
    %252 = vmatprep.subr.bf16.mxu0 0
    %253 = vmatpush1.bf16.msra.mxu0 0
    %254 = vmatprep.subr.bf16.mxu0 0
    %255 = vmatpush1.bf16.msra.mxu0 0
    %256 = vmatprep.subr.bf16.mxu0 0
    %257 = vmatpush1.bf16.msra.mxu0 0
    %258 = vmatprep.subr.bf16.mxu0 0
    %259 = vmatpush1.bf16.msra.mxu0 0
    %260 = vmatprep.subr.bf16.mxu0 0
    %261 = vmatpush1.bf16.msra.mxu0 0
    %262 = vmatprep.subr.bf16.mxu0 0
    %263 = vmatpush1.bf16.msra.mxu0 0
    %264 = vmatprep.subr.bf16.mxu0 0
    %265 = vmatpush1.bf16.msra.mxu0 0
    %266 = vmatprep.subr.bf16.mxu0 0
    %267 = vmatpush1.bf16.msra.mxu0 0
    %268 = vmatprep.subr.bf16.mxu0 0
    %269 = vmatpush1.bf16.msra.mxu0 0
    %270 = vmatprep.subr.bf16.mxu0 0
    %271 = vmatpush1.bf16.msra.mxu0 0
    %272 = vmatprep.subr.bf16.mxu0 0
    %273 = vmatpush1.bf16.msra.mxu0 0
    %274 = vmatprep.subr.bf16.mxu0 0
    %275 = vmatpush1.bf16.msra.mxu0 0
    %276 = vmatprep.subr.bf16.mxu0 0
    %277 = vmatpush1.bf16.msra.mxu0 0
    %278 = vmatprep.subr.bf16.mxu0 0
    %279 = vmatpush1.bf16.msra.mxu0 0
    %280 = vmatprep.mubr.bf16.mxu0 0
    %281 = vmatmul.mubr.bf16.gmra.mrb[0].mxu0 %v246
    %v282 = vpop.f32.mrb[0].mxu0
    %v283 = vadd.f32 %v231, %v282
    %v284 = vpop.f32.mrb[0].mxu0
    %v285 = vpop.f32.mrb[0].mxu0
    %v286 = vpop.f32.mrb[0].mxu0
    %287 = vdwg.mxu0
    %v288 = vlaneseq
    %v289 = vand.u32 %v288, 127
    %vm290 = vcmp.lt.s32.totalorder %v289, 8
    %v291 = vsel %vm290, %v283, 0.0
    %292 = vadd.xlane.f32.xlu0 %v291
    %v293 = vpop.xlane.xlu0 %292
    %v294 = vmul.f32 %v293, 0.125
    %v295 = vsub.f32 %v283, %v294
    %v296 = vsel %vm290, %v295, 0.0
    %v297 = vmul.f32 %v296, %v296
    %298 = vadd.xlane.f32.xlu0 %v297
    %v299 = vpop.xlane.xlu0 %298
    %v300 = vmul.f32 %v299, 0.125
    %v301 = vadd.f32 %v300, 1e-05
    %v302 = vrsqrt.pop %v301
    %v303 = vmul.f32 %v295, %v302
    %304 = vst [vmem:[#allocation10] sm:$0xff] %v303
    // Predicated region
    $region42: #{tpu_custom_call.1} parent=1 // pred_check
      _
    $region43: #{tpu_custom_call.1} parent=1 // pred_check_branch
      %306 = sbr.rel (0) target = $region45
    $region44: #{tpu_custom_call.1} parent=1 // pred_region
      %s308 = ssub.s32 128, 128
      %309 = vsyncadd [#allocation5], %s308
      %s311 = sshll.u32 [#allocation10], 4
      %s312 = int_to_ptr.vmem [resolvable:$true] %s311
      %314 = dma.vmem_to_hbm [thread:$0]  %s312, 128, %s7, [#allocation5]
    $region45: #{tpu_custom_call.1} parent=1 // pred_fallthru
      _
    // Predicated region
    $region46: #{tpu_custom_call.1} parent=1 // pred_check
      _
    $region47: #{tpu_custom_call.1} parent=1 // pred_check_branch
      %316 = sbr.rel (0) target = $region49
    $region48: #{tpu_custom_call.1} parent=1 // pred_region
      %317 = dma.done [#allocation5], 128
    $region49: #{tpu_custom_call.1} parent=1 // pred_fallthru
      _
    %318 = vsyncpa [#allocation4], 1
    %319 = vsyncpa [#allocation9], 1
    %320 = vsyncpa [#allocation5], 1
    %321 = vsyncpa [#allocation6], 1

</llo_original>
